<compile_context>
chip_gen: v5e
topology: v5e:2x2
jax: 0.10.0
libtpu: 0.0.40
codegen_flags: <defaults>
</compile_context>

<pallas_src>
import functools

import numpy as np
import jax
import jax.numpy as jnp
from jax.experimental import pallas as pl
from jax.experimental.pallas import tpu as pltpu


def _make_border_masks(H, W):
    """masks[t, p] == 1.0 iff tap t=(dy,dx) reads an in-bounds pixel for output p."""
    masks = np.zeros((9, H * W), np.float32)
    hh, ww = np.divmod(np.arange(H * W), W)
    for t in range(9):
        dy, dx = t // 3, t % 3
        ok = ((hh + dy - 1 >= 0) & (hh + dy - 1 < H) &
              (ww + dx - 1 >= 0) & (ww + dx - 1 < W))
        masks[t] = ok.astype(np.float32)
    return masks


def _residual_block2_kernel(mask_ref, x_ref, w1_ref, b1_ref, w2_ref, b2_ref,
                            o_ref, *, H, W, C):
    """One image per grid step.
       mask_ref: (9, HW)    border masks (1.0 inside, 0.0 where zero-padding applies)
       x_ref:    (1, C, HW) input image, spatial flattened onto the lane axis
       w1/w2:    (C, 9C)    conv taps packed as [c_out, (dy, dx, c_in)]
       b1/b2:    (C, 1)     biases
       o_ref:    (1, C, HW) output
    """
    HW = H * W
    x = x_ref[0, :, :]               # (C, HW) f32
    masks = mask_ref[...]            # (9, HW) f32

    def im2col(a):
        # Stack the 9 zero-padded shifted copies of `a` on the sublane axis: (9C, HW).
        slabs = []
        for t in range(9):
            dy, dx = t // 3, t % 3
            off = (dy - 1) * W + (dx - 1)          # flat source offset for this tap
            shift = (-off) % HW                    # roll amount (static)
            rolled = a if shift == 0 else pltpu.roll(a, shift, 1)
            slabs.append(jnp.where(masks[t:t + 1, :] > 0.5, rolled, 0.0))
        return jnp.concatenate(slabs, axis=0)

    # conv1 + ReLU : single MXU matmul, lane-dense (C, HW) result.
    y1 = jnp.dot(w1_ref[...], im2col(x), preferred_element_type=jnp.float32)
    y1 = jnp.maximum(y1 + b1_ref[...], 0.0)

    # conv2 (no intermediate padded scratch: same roll+mask im2col on y1).
    y2 = jnp.dot(w2_ref[...], im2col(y1), preferred_element_type=jnp.float32)
    y2 = y2 + b2_ref[...]

    # averaged residual + ReLU, lane-dense store.
    o_ref[0, :, :] = jnp.maximum((x + y2) * 0.5, 0.0).astype(o_ref.dtype)


def residual_block2(x_nchw, w1, b1, w2, b2):
    """x_nchw: (N, C, H, W) f32.  w*: (C_out, C_in, 3, 3).  b*: (C,)."""
    N, C, H, W = x_nchw.shape
    HW = H * W

    # Glue (plain JAX, all cheap reshapes/transposes on tiny weight tensors):
    x = x_nchw.reshape(N, C, HW).astype(jnp.float32)          # free reshape, no transpose
    # (C_out, C_in, kh, kw) -> (C_out, kh, kw, C_in) -> (C_out, 9*C_in)
    w1_t = jnp.transpose(w1, (0, 2, 3, 1)).reshape(C, 9 * C).astype(jnp.float32)
    w2_t = jnp.transpose(w2, (0, 2, 3, 1)).reshape(C, 9 * C).astype(jnp.float32)
    b1_t = b1.reshape(C, 1).astype(jnp.float32)
    b2_t = b2.reshape(C, 1).astype(jnp.float32)
    masks = jnp.asarray(_make_border_masks(H, W))

    kernel = functools.partial(_residual_block2_kernel, H=H, W=W, C=C)

    out = pl.pallas_call(
        kernel,
        out_shape=jax.ShapeDtypeStruct((N, C, HW), jnp.float32),
        grid=(N,),
        in_specs=[
            pl.BlockSpec((9, HW), lambda n: (0, 0)),          # border masks (grid-invariant)
            pl.BlockSpec((1, C, HW), lambda n: (n, 0, 0)),    # one image per grid step
            pl.BlockSpec((C, 9 * C), lambda n: (0, 0)),       # conv1 weights
            pl.BlockSpec((C, 1), lambda n: (0, 0)),           # conv1 bias
            pl.BlockSpec((C, 9 * C), lambda n: (0, 0)),       # conv2 weights
            pl.BlockSpec((C, 1), lambda n: (0, 0)),           # conv2 bias
        ],
        out_specs=pl.BlockSpec((1, C, HW), lambda n: (n, 0, 0)),
        compiler_params=pltpu.CompilerParams(
            dimension_semantics=("parallel",)),               # both TCs on v7x
    )(masks, x, w1_t, b1_t, w2_t, b2_t)

    return out.reshape(N, C, H, W)


if __name__ == "__main__":
    N, C, H, W = 2, 4, 16, 16
    key = jax.random.PRNGKey(0)
    k1, k2, k3, k4, k5 = jax.random.split(key, 5)

    # deterministic synthetic parameters (Conv2d-style uniform init bounds)
    x = jax.random.normal(k1, (N, C, H, W), jnp.float32)
    bound = 1.0 / ((C * 9) ** 0.5)
    w1 = jax.random.uniform(k2, (C, C, 3, 3), jnp.float32, -bound, bound)
    b1 = jax.random.uniform(k3, (C,), jnp.float32, -bound, bound)
    w2 = jax.random.uniform(k4, (C, C, 3, 3), jnp.float32, -bound, bound)
    b2 = jax.random.uniform(k5, (C,), jnp.float32, -bound, bound)

    out = jax.block_until_ready(residual_block2(x, w1, b1, w2, b2))

    # pure-JAX reference with identical semantics to the PyTorch module
    def ref(x, w1, b1, w2, b2):
        dn = ("NCHW", "OIHW", "NCHW")
        y = jax.lax.conv_general_dilated(x, w1, (1, 1), ((1, 1), (1, 1)),
                                         dimension_numbers=dn)
        y = jax.nn.relu(y + b1.reshape(1, C, 1, 1))
        y = jax.lax.conv_general_dilated(y, w2, (1, 1), ((1, 1), (1, 1)),
                                         dimension_numbers=dn)
        y = y + b2.reshape(1, C, 1, 1)
        return jax.nn.relu((x + y) * 0.5)

    expected = ref(x, w1, b1, w2, b2)
    assert out.shape == (N, C, H, W) and out.dtype == jnp.float32
    assert jnp.allclose(out, expected, atol=1e-4, rtol=1e-4), \
        float(jnp.max(jnp.abs(out - expected)))
    print("KERNEL_OK")
</pallas_src>

<mosaic_0001>
module attributes {stable_mosaic.version = 11 : i64} {
  func.func @_residual_block2_kernel(%arg0: i32, %arg1: memref<9x256xf32, #tpu.memory_space<vmem>>, %arg2: memref<1x4x256xf32, #tpu.memory_space<vmem>>, %arg3: memref<4x36xf32, #tpu.memory_space<vmem>>, %arg4: memref<4x1xf32, #tpu.memory_space<vmem>>, %arg5: memref<4x36xf32, #tpu.memory_space<vmem>>, %arg6: memref<4x1xf32, #tpu.memory_space<vmem>>, %arg7: memref<1x4x256xf32, #tpu.memory_space<vmem>>) attributes {dimension_semantics = [#tpu.dimension_semantics<parallel>], iteration_bounds = array<i64: 2>, scalar_prefetch = 0 : i64, scratch_operands = 0 : i64, tpu.core_type = #tpu.core_type<tc>, window_params = [{pipeline_mode = #tpu.pipeline_mode<synchronous>, transform_indices = @transform_0, window_bounds = array<i64: 9, 256>}, {transform_indices = @transform_1, window_bounds = array<i64: 1, 4, 256>}, {pipeline_mode = #tpu.pipeline_mode<synchronous>, transform_indices = @transform_2, window_bounds = array<i64: 4, 36>}, {pipeline_mode = #tpu.pipeline_mode<synchronous>, transform_indices = @transform_3, window_bounds = array<i64: 4, 1>}, {pipeline_mode = #tpu.pipeline_mode<synchronous>, transform_indices = @transform_4, window_bounds = array<i64: 4, 36>}, {pipeline_mode = #tpu.pipeline_mode<synchronous>, transform_indices = @transform_5, window_bounds = array<i64: 4, 1>}, {transform_indices = @transform_6, window_bounds = array<i64: 1, 4, 256>}]} {
    %c0 = arith.constant 0 : index
    %c0_0 = arith.constant 0 : index
    %c0_1 = arith.constant 0 : index
    %0 = vector.load %arg2[%c0, %c0_0, %c0_1] : memref<1x4x256xf32, #tpu.memory_space<vmem>>, vector<1x4x256xf32>
    %1 = vector.shape_cast %0 : vector<1x4x256xf32> to vector<4x256xf32>
    %c0_2 = arith.constant 0 : index
    %c0_3 = arith.constant 0 : index
    %2 = vector.load %arg1[%c0_2, %c0_3] : memref<9x256xf32, #tpu.memory_space<vmem>>, vector<9x256xf32>
    %c0_4 = arith.constant 0 : index
    %c0_5 = arith.constant 0 : index
    %3 = vector.load %arg3[%c0_4, %c0_5] : memref<4x36xf32, #tpu.memory_space<vmem>>, vector<4x36xf32>
    %c17_i32 = arith.constant 17 : i32
    %4 = tpu.dynamic_rotate %1 by %c17_i32 dim 1 : vector<4x256xf32>, i32 -> vector<4x256xf32>
    %5 = vector.extract_strided_slice %2 {offsets = [0, 0], sizes = [1, 256], strides = [1, 1]} : vector<9x256xf32> to vector<1x256xf32>
    %cst = arith.constant 5.000000e-01 : f32
    %6 = vector.broadcast %cst : f32 to vector<1x256xf32>
    %7 = arith.cmpf ogt, %5, %6 : vector<1x256xf32>
    %cst_6 = arith.constant 0.000000e+00 : f32
    %8 = vector.shape_cast %7 : vector<1x256xi1> to vector<1x256xi1>
    %9 = vector.broadcast %8 : vector<1x256xi1> to vector<4x256xi1>
    %10 = vector.broadcast %cst_6 : f32 to vector<4x256xf32>
    %11 = arith.select %9, %4, %10 : vector<4x256xi1>, vector<4x256xf32>
    %c16_i32 = arith.constant 16 : i32
    %12 = tpu.dynamic_rotate %1 by %c16_i32 dim 1 : vector<4x256xf32>, i32 -> vector<4x256xf32>
    %13 = vector.extract_strided_slice %2 {offsets = [1, 0], sizes = [1, 256], strides = [1, 1]} : vector<9x256xf32> to vector<1x256xf32>
    %cst_7 = arith.constant 5.000000e-01 : f32
    %14 = vector.broadcast %cst_7 : f32 to vector<1x256xf32>
    %15 = arith.cmpf ogt, %13, %14 : vector<1x256xf32>
    %cst_8 = arith.constant 0.000000e+00 : f32
    %16 = vector.shape_cast %15 : vector<1x256xi1> to vector<1x256xi1>
    %17 = vector.broadcast %16 : vector<1x256xi1> to vector<4x256xi1>
    %18 = vector.broadcast %cst_8 : f32 to vector<4x256xf32>
    %19 = arith.select %17, %12, %18 : vector<4x256xi1>, vector<4x256xf32>
    %c15_i32 = arith.constant 15 : i32
    %20 = tpu.dynamic_rotate %1 by %c15_i32 dim 1 : vector<4x256xf32>, i32 -> vector<4x256xf32>
    %21 = vector.extract_strided_slice %2 {offsets = [2, 0], sizes = [1, 256], strides = [1, 1]} : vector<9x256xf32> to vector<1x256xf32>
    %cst_9 = arith.constant 5.000000e-01 : f32
    %22 = vector.broadcast %cst_9 : f32 to vector<1x256xf32>
    %23 = arith.cmpf ogt, %21, %22 : vector<1x256xf32>
    %cst_10 = arith.constant 0.000000e+00 : f32
    %24 = vector.shape_cast %23 : vector<1x256xi1> to vector<1x256xi1>
    %25 = vector.broadcast %24 : vector<1x256xi1> to vector<4x256xi1>
    %26 = vector.broadcast %cst_10 : f32 to vector<4x256xf32>
    %27 = arith.select %25, %20, %26 : vector<4x256xi1>, vector<4x256xf32>
    %c1_i32 = arith.constant 1 : i32
    %28 = tpu.dynamic_rotate %1 by %c1_i32 dim 1 : vector<4x256xf32>, i32 -> vector<4x256xf32>
    %29 = vector.extract_strided_slice %2 {offsets = [3, 0], sizes = [1, 256], strides = [1, 1]} : vector<9x256xf32> to vector<1x256xf32>
    %cst_11 = arith.constant 5.000000e-01 : f32
    %30 = vector.broadcast %cst_11 : f32 to vector<1x256xf32>
    %31 = arith.cmpf ogt, %29, %30 : vector<1x256xf32>
    %cst_12 = arith.constant 0.000000e+00 : f32
    %32 = vector.shape_cast %31 : vector<1x256xi1> to vector<1x256xi1>
    %33 = vector.broadcast %32 : vector<1x256xi1> to vector<4x256xi1>
    %34 = vector.broadcast %cst_12 : f32 to vector<4x256xf32>
    %35 = arith.select %33, %28, %34 : vector<4x256xi1>, vector<4x256xf32>
    %36 = vector.extract_strided_slice %2 {offsets = [4, 0], sizes = [1, 256], strides = [1, 1]} : vector<9x256xf32> to vector<1x256xf32>
    %cst_13 = arith.constant 5.000000e-01 : f32
    %37 = vector.broadcast %cst_13 : f32 to vector<1x256xf32>
    %38 = arith.cmpf ogt, %36, %37 : vector<1x256xf32>
    %cst_14 = arith.constant 0.000000e+00 : f32
    %39 = vector.shape_cast %38 : vector<1x256xi1> to vector<1x256xi1>
    %40 = vector.broadcast %39 : vector<1x256xi1> to vector<4x256xi1>
    %41 = vector.broadcast %cst_14 : f32 to vector<4x256xf32>
    %42 = arith.select %40, %1, %41 : vector<4x256xi1>, vector<4x256xf32>
    %c255_i32 = arith.constant 255 : i32
    %43 = tpu.dynamic_rotate %1 by %c255_i32 dim 1 : vector<4x256xf32>, i32 -> vector<4x256xf32>
    %44 = vector.extract_strided_slice %2 {offsets = [5, 0], sizes = [1, 256], strides = [1, 1]} : vector<9x256xf32> to vector<1x256xf32>
    %cst_15 = arith.constant 5.000000e-01 : f32
    %45 = vector.broadcast %cst_15 : f32 to vector<1x256xf32>
    %46 = arith.cmpf ogt, %44, %45 : vector<1x256xf32>
    %cst_16 = arith.constant 0.000000e+00 : f32
    %47 = vector.shape_cast %46 : vector<1x256xi1> to vector<1x256xi1>
    %48 = vector.broadcast %47 : vector<1x256xi1> to vector<4x256xi1>
    %49 = vector.broadcast %cst_16 : f32 to vector<4x256xf32>
    %50 = arith.select %48, %43, %49 : vector<4x256xi1>, vector<4x256xf32>
    %c241_i32 = arith.constant 241 : i32
    %51 = tpu.dynamic_rotate %1 by %c241_i32 dim 1 : vector<4x256xf32>, i32 -> vector<4x256xf32>
    %52 = vector.extract_strided_slice %2 {offsets = [6, 0], sizes = [1, 256], strides = [1, 1]} : vector<9x256xf32> to vector<1x256xf32>
    %cst_17 = arith.constant 5.000000e-01 : f32
    %53 = vector.broadcast %cst_17 : f32 to vector<1x256xf32>
    %54 = arith.cmpf ogt, %52, %53 : vector<1x256xf32>
    %cst_18 = arith.constant 0.000000e+00 : f32
    %55 = vector.shape_cast %54 : vector<1x256xi1> to vector<1x256xi1>
    %56 = vector.broadcast %55 : vector<1x256xi1> to vector<4x256xi1>
    %57 = vector.broadcast %cst_18 : f32 to vector<4x256xf32>
    %58 = arith.select %56, %51, %57 : vector<4x256xi1>, vector<4x256xf32>
    %c240_i32 = arith.constant 240 : i32
    %59 = tpu.dynamic_rotate %1 by %c240_i32 dim 1 : vector<4x256xf32>, i32 -> vector<4x256xf32>
    %60 = vector.extract_strided_slice %2 {offsets = [7, 0], sizes = [1, 256], strides = [1, 1]} : vector<9x256xf32> to vector<1x256xf32>
    %cst_19 = arith.constant 5.000000e-01 : f32
    %61 = vector.broadcast %cst_19 : f32 to vector<1x256xf32>
    %62 = arith.cmpf ogt, %60, %61 : vector<1x256xf32>
    %cst_20 = arith.constant 0.000000e+00 : f32
    %63 = vector.shape_cast %62 : vector<1x256xi1> to vector<1x256xi1>
    %64 = vector.broadcast %63 : vector<1x256xi1> to vector<4x256xi1>
    %65 = vector.broadcast %cst_20 : f32 to vector<4x256xf32>
    %66 = arith.select %64, %59, %65 : vector<4x256xi1>, vector<4x256xf32>
    %c239_i32 = arith.constant 239 : i32
    %67 = tpu.dynamic_rotate %1 by %c239_i32 dim 1 : vector<4x256xf32>, i32 -> vector<4x256xf32>
    %68 = vector.extract_strided_slice %2 {offsets = [8, 0], sizes = [1, 256], strides = [1, 1]} : vector<9x256xf32> to vector<1x256xf32>
    %cst_21 = arith.constant 5.000000e-01 : f32
    %69 = vector.broadcast %cst_21 : f32 to vector<1x256xf32>
    %70 = arith.cmpf ogt, %68, %69 : vector<1x256xf32>
    %cst_22 = arith.constant 0.000000e+00 : f32
    %71 = vector.shape_cast %70 : vector<1x256xi1> to vector<1x256xi1>
    %72 = vector.broadcast %71 : vector<1x256xi1> to vector<4x256xi1>
    %73 = vector.broadcast %cst_22 : f32 to vector<4x256xf32>
    %74 = arith.select %72, %67, %73 : vector<4x256xi1>, vector<4x256xf32>
    %75 = tpu.concatenate %11, %19, %27, %35, %42, %50, %58, %66, %74 in 0 : vector<4x256xf32>, vector<4x256xf32>, vector<4x256xf32>, vector<4x256xf32>, vector<4x256xf32>, vector<4x256xf32>, vector<4x256xf32>, vector<4x256xf32>, vector<4x256xf32> -> vector<36x256xf32>
    %cst_23 = arith.constant dense<0.000000e+00> : vector<4x256xf32>
    %76 = tpu.matmul %3, %75, %cst_23 {dimension_numbers = #tpu.dot_dimension_numbers<[1], [0], [0], [1], [0, 0, 1, 1], [], []>} : vector<4x36xf32>, vector<36x256xf32>, vector<4x256xf32> -> vector<4x256xf32>
    %c0_24 = arith.constant 0 : index
    %c0_25 = arith.constant 0 : index
    %77 = vector.load %arg4[%c0_24, %c0_25] : memref<4x1xf32, #tpu.memory_space<vmem>>, vector<4x1xf32>
    %78 = vector.broadcast %77 : vector<4x1xf32> to vector<4x256xf32>
    %79 = arith.addf %76, %78 : vector<4x256xf32>
    %cst_26 = arith.constant 0.000000e+00 : f32
    %80 = vector.broadcast %cst_26 : f32 to vector<4x256xf32>
    %81 = arith.maximumf %79, %80 : vector<4x256xf32>
    %c0_27 = arith.constant 0 : index
    %c0_28 = arith.constant 0 : index
    %82 = vector.load %arg5[%c0_27, %c0_28] : memref<4x36xf32, #tpu.memory_space<vmem>>, vector<4x36xf32>
    %c17_i32_29 = arith.constant 17 : i32
    %83 = tpu.dynamic_rotate %81 by %c17_i32_29 dim 1 : vector<4x256xf32>, i32 -> vector<4x256xf32>
    %84 = vector.extract_strided_slice %2 {offsets = [0, 0], sizes = [1, 256], strides = [1, 1]} : vector<9x256xf32> to vector<1x256xf32>
    %cst_30 = arith.constant 5.000000e-01 : f32
    %85 = vector.broadcast %cst_30 : f32 to vector<1x256xf32>
    %86 = arith.cmpf ogt, %84, %85 : vector<1x256xf32>
    %cst_31 = arith.constant 0.000000e+00 : f32
    %87 = vector.shape_cast %86 : vector<1x256xi1> to vector<1x256xi1>
    %88 = vector.broadcast %87 : vector<1x256xi1> to vector<4x256xi1>
    %89 = vector.broadcast %cst_31 : f32 to vector<4x256xf32>
    %90 = arith.select %88, %83, %89 : vector<4x256xi1>, vector<4x256xf32>
    %c16_i32_32 = arith.constant 16 : i32
    %91 = tpu.dynamic_rotate %81 by %c16_i32_32 dim 1 : vector<4x256xf32>, i32 -> vector<4x256xf32>
    %92 = vector.extract_strided_slice %2 {offsets = [1, 0], sizes = [1, 256], strides = [1, 1]} : vector<9x256xf32> to vector<1x256xf32>
    %cst_33 = arith.constant 5.000000e-01 : f32
    %93 = vector.broadcast %cst_33 : f32 to vector<1x256xf32>
    %94 = arith.cmpf ogt, %92, %93 : vector<1x256xf32>
    %cst_34 = arith.constant 0.000000e+00 : f32
    %95 = vector.shape_cast %94 : vector<1x256xi1> to vector<1x256xi1>
    %96 = vector.broadcast %95 : vector<1x256xi1> to vector<4x256xi1>
    %97 = vector.broadcast %cst_34 : f32 to vector<4x256xf32>
    %98 = arith.select %96, %91, %97 : vector<4x256xi1>, vector<4x256xf32>
    %c15_i32_35 = arith.constant 15 : i32
    %99 = tpu.dynamic_rotate %81 by %c15_i32_35 dim 1 : vector<4x256xf32>, i32 -> vector<4x256xf32>
    %100 = vector.extract_strided_slice %2 {offsets = [2, 0], sizes = [1, 256], strides = [1, 1]} : vector<9x256xf32> to vector<1x256xf32>
    %cst_36 = arith.constant 5.000000e-01 : f32
    %101 = vector.broadcast %cst_36 : f32 to vector<1x256xf32>
    %102 = arith.cmpf ogt, %100, %101 : vector<1x256xf32>
    %cst_37 = arith.constant 0.000000e+00 : f32
    %103 = vector.shape_cast %102 : vector<1x256xi1> to vector<1x256xi1>
    %104 = vector.broadcast %103 : vector<1x256xi1> to vector<4x256xi1>
    %105 = vector.broadcast %cst_37 : f32 to vector<4x256xf32>
    %106 = arith.select %104, %99, %105 : vector<4x256xi1>, vector<4x256xf32>
    %c1_i32_38 = arith.constant 1 : i32
    %107 = tpu.dynamic_rotate %81 by %c1_i32_38 dim 1 : vector<4x256xf32>, i32 -> vector<4x256xf32>
    %108 = vector.extract_strided_slice %2 {offsets = [3, 0], sizes = [1, 256], strides = [1, 1]} : vector<9x256xf32> to vector<1x256xf32>
    %cst_39 = arith.constant 5.000000e-01 : f32
    %109 = vector.broadcast %cst_39 : f32 to vector<1x256xf32>
    %110 = arith.cmpf ogt, %108, %109 : vector<1x256xf32>
    %cst_40 = arith.constant 0.000000e+00 : f32
    %111 = vector.shape_cast %110 : vector<1x256xi1> to vector<1x256xi1>
    %112 = vector.broadcast %111 : vector<1x256xi1> to vector<4x256xi1>
    %113 = vector.broadcast %cst_40 : f32 to vector<4x256xf32>
    %114 = arith.select %112, %107, %113 : vector<4x256xi1>, vector<4x256xf32>
    %115 = vector.extract_strided_slice %2 {offsets = [4, 0], sizes = [1, 256], strides = [1, 1]} : vector<9x256xf32> to vector<1x256xf32>
    %cst_41 = arith.constant 5.000000e-01 : f32
    %116 = vector.broadcast %cst_41 : f32 to vector<1x256xf32>
    %117 = arith.cmpf ogt, %115, %116 : vector<1x256xf32>
    %cst_42 = arith.constant 0.000000e+00 : f32
    %118 = vector.shape_cast %117 : vector<1x256xi1> to vector<1x256xi1>
    %119 = vector.broadcast %118 : vector<1x256xi1> to vector<4x256xi1>
    %120 = vector.broadcast %cst_42 : f32 to vector<4x256xf32>
    %121 = arith.select %119, %81, %120 : vector<4x256xi1>, vector<4x256xf32>
    %c255_i32_43 = arith.constant 255 : i32
    %122 = tpu.dynamic_rotate %81 by %c255_i32_43 dim 1 : vector<4x256xf32>, i32 -> vector<4x256xf32>
    %123 = vector.extract_strided_slice %2 {offsets = [5, 0], sizes = [1, 256], strides = [1, 1]} : vector<9x256xf32> to vector<1x256xf32>
    %cst_44 = arith.constant 5.000000e-01 : f32
    %124 = vector.broadcast %cst_44 : f32 to vector<1x256xf32>
    %125 = arith.cmpf ogt, %123, %124 : vector<1x256xf32>
    %cst_45 = arith.constant 0.000000e+00 : f32
    %126 = vector.shape_cast %125 : vector<1x256xi1> to vector<1x256xi1>
    %127 = vector.broadcast %126 : vector<1x256xi1> to vector<4x256xi1>
    %128 = vector.broadcast %cst_45 : f32 to vector<4x256xf32>
    %129 = arith.select %127, %122, %128 : vector<4x256xi1>, vector<4x256xf32>
    %c241_i32_46 = arith.constant 241 : i32
    %130 = tpu.dynamic_rotate %81 by %c241_i32_46 dim 1 : vector<4x256xf32>, i32 -> vector<4x256xf32>
    %131 = vector.extract_strided_slice %2 {offsets = [6, 0], sizes = [1, 256], strides = [1, 1]} : vector<9x256xf32> to vector<1x256xf32>
    %cst_47 = arith.constant 5.000000e-01 : f32
    %132 = vector.broadcast %cst_47 : f32 to vector<1x256xf32>
    %133 = arith.cmpf ogt, %131, %132 : vector<1x256xf32>
    %cst_48 = arith.constant 0.000000e+00 : f32
    %134 = vector.shape_cast %133 : vector<1x256xi1> to vector<1x256xi1>
    %135 = vector.broadcast %134 : vector<1x256xi1> to vector<4x256xi1>
    %136 = vector.broadcast %cst_48 : f32 to vector<4x256xf32>
    %137 = arith.select %135, %130, %136 : vector<4x256xi1>, vector<4x256xf32>
    %c240_i32_49 = arith.constant 240 : i32
    %138 = tpu.dynamic_rotate %81 by %c240_i32_49 dim 1 : vector<4x256xf32>, i32 -> vector<4x256xf32>
    %139 = vector.extract_strided_slice %2 {offsets = [7, 0], sizes = [1, 256], strides = [1, 1]} : vector<9x256xf32> to vector<1x256xf32>
    %cst_50 = arith.constant 5.000000e-01 : f32
    %140 = vector.broadcast %cst_50 : f32 to vector<1x256xf32>
    %141 = arith.cmpf ogt, %139, %140 : vector<1x256xf32>
    %cst_51 = arith.constant 0.000000e+00 : f32
    %142 = vector.shape_cast %141 : vector<1x256xi1> to vector<1x256xi1>
    %143 = vector.broadcast %142 : vector<1x256xi1> to vector<4x256xi1>
    %144 = vector.broadcast %cst_51 : f32 to vector<4x256xf32>
    %145 = arith.select %143, %138, %144 : vector<4x256xi1>, vector<4x256xf32>
    %c239_i32_52 = arith.constant 239 : i32
    %146 = tpu.dynamic_rotate %81 by %c239_i32_52 dim 1 : vector<4x256xf32>, i32 -> vector<4x256xf32>
    %147 = vector.extract_strided_slice %2 {offsets = [8, 0], sizes = [1, 256], strides = [1, 1]} : vector<9x256xf32> to vector<1x256xf32>
    %cst_53 = arith.constant 5.000000e-01 : f32
    %148 = vector.broadcast %cst_53 : f32 to vector<1x256xf32>
    %149 = arith.cmpf ogt, %147, %148 : vector<1x256xf32>
    %cst_54 = arith.constant 0.000000e+00 : f32
    %150 = vector.shape_cast %149 : vector<1x256xi1> to vector<1x256xi1>
    %151 = vector.broadcast %150 : vector<1x256xi1> to vector<4x256xi1>
    %152 = vector.broadcast %cst_54 : f32 to vector<4x256xf32>
    %153 = arith.select %151, %146, %152 : vector<4x256xi1>, vector<4x256xf32>
    %154 = tpu.concatenate %90, %98, %106, %114, %121, %129, %137, %145, %153 in 0 : vector<4x256xf32>, vector<4x256xf32>, vector<4x256xf32>, vector<4x256xf32>, vector<4x256xf32>, vector<4x256xf32>, vector<4x256xf32>, vector<4x256xf32>, vector<4x256xf32> -> vector<36x256xf32>
    %cst_55 = arith.constant dense<0.000000e+00> : vector<4x256xf32>
    %155 = tpu.matmul %82, %154, %cst_55 {dimension_numbers = #tpu.dot_dimension_numbers<[1], [0], [0], [1], [0, 0, 1, 1], [], []>} : vector<4x36xf32>, vector<36x256xf32>, vector<4x256xf32> -> vector<4x256xf32>
    %c0_56 = arith.constant 0 : index
    %c0_57 = arith.constant 0 : index
    %156 = vector.load %arg6[%c0_56, %c0_57] : memref<4x1xf32, #tpu.memory_space<vmem>>, vector<4x1xf32>
    %157 = vector.broadcast %156 : vector<4x1xf32> to vector<4x256xf32>
    %158 = arith.addf %155, %157 : vector<4x256xf32>
    %159 = arith.addf %1, %158 : vector<4x256xf32>
    %cst_58 = arith.constant 5.000000e-01 : f32
    %160 = vector.broadcast %cst_58 : f32 to vector<4x256xf32>
    %161 = arith.mulf %159, %160 : vector<4x256xf32>
    %cst_59 = arith.constant 0.000000e+00 : f32
    %162 = vector.broadcast %cst_59 : f32 to vector<4x256xf32>
    %163 = arith.maximumf %161, %162 : vector<4x256xf32>
    %c0_60 = arith.constant 0 : index
    %c0_61 = arith.constant 0 : index
    %c0_62 = arith.constant 0 : index
    %164 = vector.load %arg7[%c0_60, %c0_61, %c0_62] : memref<1x4x256xf32, #tpu.memory_space<vmem>>, vector<1x4x256xf32>
    %165 = vector.shape_cast %164 : vector<1x4x256xf32> to vector<4x256xf32>
    %166 = vector.shape_cast %163 : vector<4x256xf32> to vector<1x4x256xf32>
    tpu.vector_store %arg7[%c0_60, %c0_61, %c0_62], %166 {strides = array<i32>} : memref<1x4x256xf32, #tpu.memory_space<vmem>>, vector<1x4x256xf32>,
    return
  }
  func.func @transform_0(%arg0: i32) -> (i32, i32) {
    %c0_i32 = arith.constant 0 : i32
    %c0_i32_0 = arith.constant 0 : i32
    %c0_i32_1 = arith.constant 0 : i32
    return %c0_i32, %c0_i32_0 : i32, i32
  }
  func.func @transform_1(%arg0: i32) -> (i32, i32, i32) {
    %c0_i32 = arith.constant 0 : i32
    %c0_i32_0 = arith.constant 0 : i32
    %c0_i32_1 = arith.constant 0 : i32
    return %arg0, %c0_i32, %c0_i32_0 : i32, i32, i32
  }
  func.func @transform_2(%arg0: i32) -> (i32, i32) {
    %c0_i32 = arith.constant 0 : i32
    %c0_i32_0 = arith.constant 0 : i32
    %c0_i32_1 = arith.constant 0 : i32
    return %c0_i32, %c0_i32_0 : i32, i32
  }
  func.func @transform_3(%arg0: i32) -> (i32, i32) {
    %c0_i32 = arith.constant 0 : i32
    %c0_i32_0 = arith.constant 0 : i32
    %c0_i32_1 = arith.constant 0 : i32
    return %c0_i32, %c0_i32_0 : i32, i32
  }
  func.func @transform_4(%arg0: i32) -> (i32, i32) {
    %c0_i32 = arith.constant 0 : i32
    %c0_i32_0 = arith.constant 0 : i32
    %c0_i32_1 = arith.constant 0 : i32
    return %c0_i32, %c0_i32_0 : i32, i32
  }
  func.func @transform_5(%arg0: i32) -> (i32, i32) {
    %c0_i32 = arith.constant 0 : i32
    %c0_i32_0 = arith.constant 0 : i32
    %c0_i32_1 = arith.constant 0 : i32
    return %c0_i32, %c0_i32_0 : i32, i32
  }
  func.func @transform_6(%arg0: i32) -> (i32, i32, i32) {
    %c0_i32 = arith.constant 0 : i32
    %c0_i32_0 = arith.constant 0 : i32
    %c0_i32_1 = arith.constant 0 : i32
    return %arg0, %c0_i32, %c0_i32_0 : i32, i32, i32
  }
}

</mosaic_0001>

<llo_original>
// kernel: tpu_custom_call.1
$region0: #{tpu_custom_call.1}
  #allocation0 [shape = 'u32[]', space=smem, size = 0x4, offset = 0x4, fixed_abs, tag = 'smem constant byte address 0x4 - core index']
  #allocation1 [shape = 'u32[72,128]{1,0:T(1,128)}', space=vmem, size = 0x9000, scoped, tag = 'internal scratch']
  %s0 = inlined_call_operand.hbm [shape: f32[9,256], index: 0, kind: input, shape index: {}]
  %s1 = inlined_call_operand.hbm [shape: f32[2,4,256], index: 1, kind: input, shape index: {}]
  %s2 = inlined_call_operand.vmem [shape: f32[4,36], index: 2, kind: input, shape index: {}]
  %s3 = inlined_call_operand.vmem [shape: f32[4,1], index: 3, kind: input, shape index: {}]
  %s4 = inlined_call_operand.vmem [shape: f32[4,36], index: 4, kind: input, shape index: {}]
  %s5 = inlined_call_operand.vmem [shape: f32[4,1], index: 5, kind: input, shape index: {}]
  %s6 = inlined_call_operand.hbm [shape: f32[2,4,256], index: 6, kind: output, shape index: {}]
  %s7 = sld [smem:[#allocation0]]
  $region65: #{tpu_custom_call.1} parent=0
    _
  %s9 = ssub.s32 1, %s7
  %s10 = scalar_select 0, %s9, %s7
  $region1: #{tpu_custom_call.1} parent=0
    #allocation2 [shape = 'u8[16384]{0}', space=vmem, size = 0x4000, scoped, tag = 'input window, operand 0, single buffered']
    #allocation3 [shape = 's32[2]{0}', space=sflag, size = 0x8, scoped, tag = 'scoped memory for tpu_custom_call.1']
    #allocation4 [shape = 's32[2]{0}', space=sflag, size = 0x8, scoped, tag = 'scoped memory for tpu_custom_call.1']
    #allocation5 [shape = 'u8[8192]{0}', space=vmem, size = 0x2000, scoped, tag = 'input window, operand 1']
    #allocation6 [shape = 's32[2]{0}', space=sflag, size = 0x8, scoped, tag = 'scoped memory for tpu_custom_call.1']
    #allocation7 [shape = 'u8[8192]{0}', space=vmem, size = 0x2000, scoped, tag = 'output window, operand 0']
    %11 = vsyncpa [#allocation3], 0
    %12 = vsyncpa [#allocation6], 0
    %s13 = scalar_lea.sflag [#allocation6], 1
    %14 = vsyncpa %s13, 0
    %15 = vsyncpa [#allocation4], 0
    %s16 = scalar_lea.sflag [#allocation4], 1
    %17 = vsyncpa %s16, 0
    loop: start=0, step=1, limit=4
    $region2: #{tpu_custom_call.1} parent=1 // loop_pre_header
      _
    $region3: #{tpu_custom_call.1} parent=1 // loop_header
      %s19 = sphi 0, %s23
      %p20 = scmp.ge.s32.totalorder %s19, 4
      %s27 = sphi 0, %s27
      %s29 = sphi 0, %s27
      %s30 = sphi 0, %s29
      %s44 = sphi 0, %s30
      %s50 = sphi 0, %s52
      %s53 = sphi 0, %s50
      %s54 = sphi 0, %s53
      %s70 = sphi 0, %s54
      %s74 = sphi 0, %s74
      %s76 = sphi 0, %s74
      %s77 = sphi 0, %s76
      %s91 = sphi 0, %s77
      %s95 = sphi 0, %s95
      %s97 = sphi 0, %s95
      %s98 = sphi 0, %s97
      %s112 = sphi 0, %s98
      %s116 = sphi 0, %s116
      %s118 = sphi 0, %s116
      %s119 = sphi 0, %s118
      %s133 = sphi 0, %s119
      %s137 = sphi 0, %s137
      %s139 = sphi 0, %s137
      %s140 = sphi 0, %s139
      %s154 = sphi 0, %s140
      %s160 = sphi 0, %s162
      %s163 = sphi 0, %s160
      %s164 = sphi 0, %s163
      %s180 = sphi 0, %s164
    $region4: #{tpu_custom_call.1} parent=1 // loop_header_branch
      %22 = sbr.rel (%p20) target = $region8
    $region5: #{tpu_custom_call.1} parent=1 // loop_body
      %s24 = ssub.s32 %s19, 1
      %s25 = ssub.s32 %s19, 2
      %s26 = sadd.s32 %s19, 1
      %s28 = sadd.s32 %s27, 1
      %p31 = scmp.eq.s32.totalorder %s19, 1
      %p32 = scmp.ne.s32.totalorder %s27, %s29
      %p33 = scmp.eq.s32.totalorder %s19, 0
      %p34 = por %p32, %p33
      %p35 = scmp.ne.s32.totalorder %s27, %s29
      %p36 = scmp.eq.s32.totalorder %s24, 1
      %p37 = por %p35, %p36
      %p38 = scmp.ne.s32.totalorder %s29, %s30
      %p39 = scmp.eq.s32.totalorder %s24, 0
      %p40 = por %p38, %p39
      %p41 = scmp.ne.s32.totalorder %s29, %s30
      %p42 = scmp.eq.s32.totalorder %s25, 1
      %p43 = por %p41, %p42
      %p45 = scmp.ne.s32.totalorder %s30, %s44
      %p46 = scmp.eq.s32.totalorder %s25, 0
      %p47 = por %p45, %p46
      %s48 = ssub.s32 %s19, %s26
      %p49 = scmp.eq.s32.totalorder %s48, 0
      %s51 = sadd.s32 %s50, 1
      %s52 = scalar_select %p49, %s50, %s51
      %p55 = pneg %p49
      %p56 = scmp.eq.s32.totalorder %s19, 1
      %p57 = por %p55, %p56
      %p58 = scmp.ne.s32.totalorder %s50, %s53
      %p59 = scmp.eq.s32.totalorder %s19, 0
      %p60 = por %p58, %p59
      %p61 = scmp.ne.s32.totalorder %s50, %s53
      %p62 = scmp.eq.s32.totalorder %s24, 1
      %p63 = por %p61, %p62
      %p64 = scmp.ne.s32.totalorder %s53, %s54
      %p65 = scmp.eq.s32.totalorder %s24, 0
      %p66 = por %p64, %p65
      %p67 = scmp.ne.s32.totalorder %s53, %s54
      %p68 = scmp.eq.s32.totalorder %s25, 1
      %p69 = por %p67, %p68
      %p71 = scmp.ne.s32.totalorder %s54, %s70
      %p72 = scmp.eq.s32.totalorder %s25, 0
      %p73 = por %p71, %p72
      %s75 = sadd.s32 %s74, 1
      %p78 = scmp.eq.s32.totalorder %s19, 1
      %p79 = scmp.ne.s32.totalorder %s74, %s76
      %p80 = scmp.eq.s32.totalorder %s19, 0
      %p81 = por %p79, %p80
      %p82 = scmp.ne.s32.totalorder %s74, %s76
      %p83 = scmp.eq.s32.totalorder %s24, 1
      %p84 = por %p82, %p83
      %p85 = scmp.ne.s32.totalorder %s76, %s77
      %p86 = scmp.eq.s32.totalorder %s24, 0
      %p87 = por %p85, %p86
      %p88 = scmp.ne.s32.totalorder %s76, %s77
      %p89 = scmp.eq.s32.totalorder %s25, 1
      %p90 = por %p88, %p89
      %p92 = scmp.ne.s32.totalorder %s77, %s91
      %p93 = scmp.eq.s32.totalorder %s25, 0
      %p94 = por %p92, %p93
      %s96 = sadd.s32 %s95, 1
      %p99 = scmp.eq.s32.totalorder %s19, 1
      %p100 = scmp.ne.s32.totalorder %s95, %s97
      %p101 = scmp.eq.s32.totalorder %s19, 0
      %p102 = por %p100, %p101
      %p103 = scmp.ne.s32.totalorder %s95, %s97
      %p104 = scmp.eq.s32.totalorder %s24, 1
      %p105 = por %p103, %p104
      %p106 = scmp.ne.s32.totalorder %s97, %s98
      %p107 = scmp.eq.s32.totalorder %s24, 0
      %p108 = por %p106, %p107
      %p109 = scmp.ne.s32.totalorder %s97, %s98
      %p110 = scmp.eq.s32.totalorder %s25, 1
      %p111 = por %p109, %p110
      %p113 = scmp.ne.s32.totalorder %s98, %s112
      %p114 = scmp.eq.s32.totalorder %s25, 0
      %p115 = por %p113, %p114
      %s117 = sadd.s32 %s116, 1
      %p120 = scmp.eq.s32.totalorder %s19, 1
      %p121 = scmp.ne.s32.totalorder %s116, %s118
      %p122 = scmp.eq.s32.totalorder %s19, 0
      %p123 = por %p121, %p122
      %p124 = scmp.ne.s32.totalorder %s116, %s118
      %p125 = scmp.eq.s32.totalorder %s24, 1
      %p126 = por %p124, %p125
      %p127 = scmp.ne.s32.totalorder %s118, %s119
      %p128 = scmp.eq.s32.totalorder %s24, 0
      %p129 = por %p127, %p128
      %p130 = scmp.ne.s32.totalorder %s118, %s119
      %p131 = scmp.eq.s32.totalorder %s25, 1
      %p132 = por %p130, %p131
      %p134 = scmp.ne.s32.totalorder %s119, %s133
      %p135 = scmp.eq.s32.totalorder %s25, 0
      %p136 = por %p134, %p135
      %s138 = sadd.s32 %s137, 1
      %p141 = scmp.eq.s32.totalorder %s19, 1
      %p142 = scmp.ne.s32.totalorder %s137, %s139
      %p143 = scmp.eq.s32.totalorder %s19, 0
      %p144 = por %p142, %p143
      %p145 = scmp.ne.s32.totalorder %s137, %s139
      %p146 = scmp.eq.s32.totalorder %s24, 1
      %p147 = por %p145, %p146
      %p148 = scmp.ne.s32.totalorder %s139, %s140
      %p149 = scmp.eq.s32.totalorder %s24, 0
      %p150 = por %p148, %p149
      %p151 = scmp.ne.s32.totalorder %s139, %s140
      %p152 = scmp.eq.s32.totalorder %s25, 1
      %p153 = por %p151, %p152
      %p155 = scmp.ne.s32.totalorder %s140, %s154
      %p156 = scmp.eq.s32.totalorder %s25, 0
      %p157 = por %p155, %p156
      %s158 = ssub.s32 %s19, %s26
      %p159 = scmp.eq.s32.totalorder %s158, 0
      %s161 = sadd.s32 %s160, 1
      %s162 = scalar_select %p159, %s160, %s161
      %p165 = pneg %p159
      %p166 = scmp.eq.s32.totalorder %s19, 1
      %p167 = por %p165, %p166
      %p168 = scmp.ne.s32.totalorder %s160, %s163
      %p169 = scmp.eq.s32.totalorder %s19, 0
      %p170 = por %p168, %p169
      %p171 = scmp.ne.s32.totalorder %s160, %s163
      %p172 = scmp.eq.s32.totalorder %s24, 1
      %p173 = por %p171, %p172
      %p174 = scmp.ne.s32.totalorder %s163, %s164
      %p175 = scmp.eq.s32.totalorder %s24, 0
      %p176 = por %p174, %p175
      %p177 = scmp.ne.s32.totalorder %s163, %s164
      %p178 = scmp.eq.s32.totalorder %s25, 1
      %p179 = por %p177, %p178
      %p181 = scmp.ne.s32.totalorder %s164, %s180
      %p182 = scmp.eq.s32.totalorder %s25, 0
      %p183 = por %p181, %p182
      %p184 = scmp.le.s32.totalorder 1, %s19
      %p185 = scmp.lt.s32.totalorder %s19, 3
      %p186 = pnand %p184, %p185
      %p187 = pneg %p186
      // Predicated region
      $region9: #{tpu_custom_call.1} parent=5 // pred_check
        _
      $region10: #{tpu_custom_call.1} parent=5 // pred_check_branch
        %189 = sbr.rel (%p186) target = $region12
      $region11: #{tpu_custom_call.1} parent=5 // pred_region
        %s190 = ssub.s32 %s19, 1
        // Predicated region
        $region13: #{tpu_custom_call.1} parent=11 // pred_check
          %p191 = pneg %p40
        $region14: #{tpu_custom_call.1} parent=11 // pred_check_branch
          %193 = sbr.rel (%p191) target = $region16
        $region15: #{tpu_custom_call.1} parent=11 // pred_region
          %195 = vsyncadd [#allocation3], 0
          %s196 = sshll.u32 %s0, 4
          %s197 = int_to_ptr.hbm [resolvable:$true] %s196
          %s198 = sshll.u32 [#allocation2], 4
          %s199 = int_to_ptr.vmem [resolvable:$true] %s198
          %204 = dma.hbm_to_vmem [thread:$0]  %s197, 512, %s199, [#allocation3], 256, 256, 16
        $region16: #{tpu_custom_call.1} parent=11 // pred_fallthru
          _
        // Predicated region
        $region17: #{tpu_custom_call.1} parent=11 // pred_check
          %p205 = pneg %p87
        $region18: #{tpu_custom_call.1} parent=11 // pred_check_branch
          %207 = sbr.rel (%p205) target = $region20
        $region19: #{tpu_custom_call.1} parent=11 // pred_region
          _
        $region20: #{tpu_custom_call.1} parent=11 // pred_fallthru
          _
        // Predicated region
        $region21: #{tpu_custom_call.1} parent=11 // pred_check
          %p208 = pneg %p108
        $region22: #{tpu_custom_call.1} parent=11 // pred_check_branch
          %210 = sbr.rel (%p208) target = $region24
        $region23: #{tpu_custom_call.1} parent=11 // pred_region
          _
        $region24: #{tpu_custom_call.1} parent=11 // pred_fallthru
          _
        // Predicated region
        $region25: #{tpu_custom_call.1} parent=11 // pred_check
          %p211 = pneg %p129
        $region26: #{tpu_custom_call.1} parent=11 // pred_check_branch
          %213 = sbr.rel (%p211) target = $region28
        $region27: #{tpu_custom_call.1} parent=11 // pred_region
          _
        $region28: #{tpu_custom_call.1} parent=11 // pred_fallthru
          _
        // Predicated region
        $region29: #{tpu_custom_call.1} parent=11 // pred_check
          %p214 = pneg %p150
        $region30: #{tpu_custom_call.1} parent=11 // pred_check_branch
          %216 = sbr.rel (%p214) target = $region32
        $region31: #{tpu_custom_call.1} parent=11 // pred_region
          _
        $region32: #{tpu_custom_call.1} parent=11 // pred_fallthru
          _
      $region12: #{tpu_custom_call.1} parent=5 // pred_fallthru
        _
      %p217 = scmp.lt.s32.totalorder %s19, 2
      // Predicated region
      $region33: #{tpu_custom_call.1} parent=5 // pred_check
        %p218 = pneg %p217
      $region34: #{tpu_custom_call.1} parent=5 // pred_check_branch
        %220 = sbr.rel (%p218) target = $region36
      $region35: #{tpu_custom_call.1} parent=5 // pred_region
        // Predicated region
        $region37: #{tpu_custom_call.1} parent=35 // pred_check
          %p221 = pneg %p60
        $region38: #{tpu_custom_call.1} parent=35 // pred_check_branch
          %223 = sbr.rel (%p221) target = $region40
        $region39: #{tpu_custom_call.1} parent=35 // pred_region
          %s224 = sand.u32 %s50, 1
          %s225 = scalar_lea.sflag [#allocation6], %s224
          %s226 = sand.u32 %s50, 1
          %s227 = smul.addr %s226, 8
          %s228 = scalar_lea.vmem [#allocation5], %s227
          %230 = vsyncadd %s225, 0
          %s231 = smul.addr %s19, 2
          %s232 = smul.addr %s231, 4
          %s233 = scalar_lea.hbm %s1, %s232
          %s235 = sshll.u32 %s233, 4
          %s236 = int_to_ptr.hbm [resolvable:$true] %s235
          %s237 = sshll.u32 %s228, 4
          %s238 = int_to_ptr.vmem [resolvable:$true] %s237
          %240 = dma.hbm_to_vmem [thread:$0]  %s236, 128, %s238, %s225
        $region40: #{tpu_custom_call.1} parent=35 // pred_fallthru
          _
      $region36: #{tpu_custom_call.1} parent=5 // pred_fallthru
        _
      %p241 = scmp.le.s32.totalorder 1, %s19
      %p242 = scmp.lt.s32.totalorder %s19, 3
      %p243 = pnand %p241, %p242
      %p244 = pneg %p243
      // Predicated region
      $region41: #{tpu_custom_call.1} parent=5 // pred_check
        _
      $region42: #{tpu_custom_call.1} parent=5 // pred_check_branch
        %246 = sbr.rel (%p243) target = $region44
      $region43: #{tpu_custom_call.1} parent=5 // pred_region
        %s247 = ssub.s32 %s19, 1
        // Predicated region
        $region45: #{tpu_custom_call.1} parent=43 // pred_check
          %p248 = pneg %p40
        $region46: #{tpu_custom_call.1} parent=43 // pred_check_branch
          %250 = sbr.rel (%p248) target = $region48
        $region47: #{tpu_custom_call.1} parent=43 // pred_region
          %252 = dma.done [#allocation3], 512
        $region48: #{tpu_custom_call.1} parent=43 // pred_fallthru
          _
        %s253 = sand.u32 %s53, 1
        %s254 = scalar_lea.sflag [#allocation6], %s253
        %s255 = sand.u32 %s53, 1
        %s256 = smul.addr %s255, 8
        %s257 = scalar_lea.vmem [#allocation5], %s256
        // Predicated region
        $region49: #{tpu_custom_call.1} parent=43 // pred_check
          %p258 = pneg %p66
        $region50: #{tpu_custom_call.1} parent=43 // pred_check_branch
          %260 = sbr.rel (%p258) target = $region52
        $region51: #{tpu_custom_call.1} parent=43 // pred_region
          %262 = dma.done %s254, 128
        $region52: #{tpu_custom_call.1} parent=43 // pred_fallthru
          _
        %p263 = pneg %p40
        %p264 = pneg %p37
        %s265 = sand.u32 %s53, 1
        %s266 = scalar_lea.sflag [#allocation6], %s265
        %s267 = sand.u32 %s53, 1
        %s268 = smul.addr %s267, 8
        %s269 = scalar_lea.vmem [#allocation5], %s268
        %p270 = pneg %p66
        %p271 = pneg %p63
        %p272 = pneg %p87
        %p273 = pneg %p84
        %p274 = pneg %p108
        %p275 = pneg %p105
        %p276 = pneg %p129
        %p277 = pneg %p126
        %p278 = pneg %p150
        %p279 = pneg %p147
        %p280 = pneg %p176
        %p281 = pneg %p173
        %s282 = sand.u32 %s163, 1
        %s283 = scalar_lea.sflag [#allocation4], %s282
        %s284 = sand.u32 %s163, 1
        %s285 = smul.addr %s284, 8
        %s286 = scalar_lea.vmem [#allocation7], %s285
        %v287 = vld [vmem:[%s257] sm:$0xff]
        %v288 = vld [vmem:[#allocation2] sm:$0xff]
        %v289 = vld [vmem:[#allocation2 + $0x8] sm:$0xff]
        %v290 = vld [vmem:[#allocation2 + $0x10] sm:$0x1]
        %v291 = vld [vmem:[#allocation2 + $0x18] sm:$0x1]
        %v292 = vld [vmem:[%s2] sm:$0xf]
        %294 = vst [vmem:[#allocation1] ss:$2 sm:$0xff] %v287
        %v295 = vld.sshfl [vmem:[#allocation1] sm:$0xff pattern:$0x75316420]
        %v296 = vld.sshfl [vmem:[#allocation1 + $0x8] sm:$0xff pattern:$0x75316420]
        %299 = vrot.lane.b32.xlu0 %v295, 17
        %v300 = vpop.permute.xlu0 %299
        %301 = vrot.lane.b32.xlu0 %v296, 17
        %v302 = vpop.permute.xlu0 %301
        %v303 = vlaneseq
        %v304 = vand.u32 %v303, 127
        %vm305 = vcmp.lt.s32.totalorder %v304, 17
        %v306 = vsel %vm305, %v300, %v302
        %v307 = vsel %vm305, %v302, %v300
        %vm308 = vcmp.gt.f32.partialorder %v288, 0.5
        %vm309 = vcmp.gt.f32.partialorder %v289, 0.5
        %v310 = vsel %vm308, 1, 0
        %v311 = vsel %vm309, 1, 0
        %v312 = vperm.slane %v310, 0
        %v313 = vperm.slane %v311, 0
        %vm314 = vcmp.eq.s32.totalorder %v312, 1
        %vm315 = vcmp.eq.s32.totalorder %v313, 1
        %v316 = vsel %vm314, %v307, 0.0
        %v317 = vsel %vm315, %v306, 0.0
        %318 = vst [vmem:[#allocation1] ss:$2 sm:$0xff] %v287
        %v319 = vld.sshfl [vmem:[#allocation1] sm:$0xff pattern:$0x75316420]
        %v320 = vld.sshfl [vmem:[#allocation1 + $0x8] sm:$0xff pattern:$0x75316420]
        %323 = vrot.lane.b32.xlu0 %v319, 16
        %v324 = vpop.permute.xlu0 %323
        %325 = vrot.lane.b32.xlu0 %v320, 16
        %v326 = vpop.permute.xlu0 %325
        %vm327 = vcmp.lt.s32.totalorder %v304, 16
        %v328 = vsel %vm327, %v324, %v326
        %v329 = vsel %vm327, %v326, %v324
        %v330 = vperm.slane %v310, 1
        %v331 = vperm.slane %v311, 1
        %vm332 = vcmp.eq.s32.totalorder %v330, 1
        %vm333 = vcmp.eq.s32.totalorder %v331, 1
        %v334 = vsel %vm332, %v329, 0.0
        %v335 = vsel %vm333, %v328, 0.0
        %336 = vst [vmem:[#allocation1] ss:$2 sm:$0xff] %v287
        %v337 = vld.sshfl [vmem:[#allocation1] sm:$0xff pattern:$0x75316420]
        %v338 = vld.sshfl [vmem:[#allocation1 + $0x8] sm:$0xff pattern:$0x75316420]
        %341 = vrot.lane.b32.xlu0 %v337, 15
        %v342 = vpop.permute.xlu0 %341
        %343 = vrot.lane.b32.xlu0 %v338, 15
        %v344 = vpop.permute.xlu0 %343
        %vm345 = vcmp.lt.s32.totalorder %v304, 15
        %v346 = vsel %vm345, %v342, %v344
        %v347 = vsel %vm345, %v344, %v342
        %v348 = vperm.slane %v310, 2
        %v349 = vperm.slane %v311, 2
        %vm350 = vcmp.eq.s32.totalorder %v348, 1
        %vm351 = vcmp.eq.s32.totalorder %v349, 1
        %v352 = vsel %vm350, %v347, 0.0
        %v353 = vsel %vm351, %v346, 0.0
        %354 = vst [vmem:[#allocation1] ss:$2 sm:$0xff] %v287
        %v355 = vld.sshfl [vmem:[#allocation1] sm:$0xff pattern:$0x75316420]
        %v356 = vld.sshfl [vmem:[#allocation1 + $0x8] sm:$0xff pattern:$0x75316420]
        %359 = vrot.lane.b32.xlu0 %v355, 1
        %v360 = vpop.permute.xlu0 %359
        %361 = vrot.lane.b32.xlu0 %v356, 1
        %v362 = vpop.permute.xlu0 %361
        %vm363 = vcmp.lt.s32.totalorder %v304, 1
        %v364 = vsel %vm363, %v360, %v362
        %v365 = vsel %vm363, %v362, %v360
        %v366 = vperm.slane %v310, 3
        %v367 = vperm.slane %v311, 3
        %vm368 = vcmp.eq.s32.totalorder %v366, 1
        %vm369 = vcmp.eq.s32.totalorder %v367, 1
        %v370 = vsel %vm368, %v365, 0.0
        %v371 = vsel %vm369, %v364, 0.0
        %v372 = vperm.slane %v310, 4
        %v373 = vperm.slane %v311, 4
        %vm374 = vcmp.eq.s32.totalorder %v372, 1
        %vm375 = vcmp.eq.s32.totalorder %v373, 1
        %376 = vst [vmem:[#allocation1] ss:$2 sm:$0xff] %v287
        %v377 = vld.sshfl [vmem:[#allocation1] sm:$0xff pattern:$0x75316420]
        %v378 = vld.sshfl [vmem:[#allocation1 + $0x8] sm:$0xff pattern:$0x75316420]
        %v381 = vsel %vm374, %v377, 0.0
        %v382 = vsel %vm375, %v378, 0.0
        %383 = vst [vmem:[#allocation1] ss:$2 sm:$0xff] %v287
        %v384 = vld.sshfl [vmem:[#allocation1] sm:$0xff pattern:$0x75316420]
        %v385 = vld.sshfl [vmem:[#allocation1 + $0x8] sm:$0xff pattern:$0x75316420]
        %388 = vrot.lane.b32.xlu0 %v384, 127
        %v389 = vpop.permute.xlu0 %388
        %390 = vrot.lane.b32.xlu0 %v385, 127
        %v391 = vpop.permute.xlu0 %390
        %vm392 = vcmp.lt.s32.totalorder %v304, 127
        %v393 = vsel %vm392, %v389, %v391
        %v394 = vsel %vm392, %v391, %v389
        %v395 = vperm.slane %v310, 5
        %v396 = vperm.slane %v311, 5
        %vm397 = vcmp.eq.s32.totalorder %v395, 1
        %vm398 = vcmp.eq.s32.totalorder %v396, 1
        %v399 = vsel %vm397, %v393, 0.0
        %v400 = vsel %vm398, %v394, 0.0
        %401 = vst [vmem:[#allocation1] ss:$2 sm:$0xff] %v287
        %v402 = vld.sshfl [vmem:[#allocation1] sm:$0xff pattern:$0x75316420]
        %v403 = vld.sshfl [vmem:[#allocation1 + $0x8] sm:$0xff pattern:$0x75316420]
        %406 = vrot.lane.b32.xlu0 %v402, 113
        %v407 = vpop.permute.xlu0 %406
        %408 = vrot.lane.b32.xlu0 %v403, 113
        %v409 = vpop.permute.xlu0 %408
        %vm410 = vcmp.lt.s32.totalorder %v304, 113
        %v411 = vsel %vm410, %v407, %v409
        %v412 = vsel %vm410, %v409, %v407
        %v413 = vperm.slane %v310, 6
        %v414 = vperm.slane %v311, 6
        %vm415 = vcmp.eq.s32.totalorder %v413, 1
        %vm416 = vcmp.eq.s32.totalorder %v414, 1
        %v417 = vsel %vm415, %v411, 0.0
        %v418 = vsel %vm416, %v412, 0.0
        %419 = vst [vmem:[#allocation1] ss:$2 sm:$0xff] %v287
        %v420 = vld.sshfl [vmem:[#allocation1] sm:$0xff pattern:$0x75316420]
        %v421 = vld.sshfl [vmem:[#allocation1 + $0x8] sm:$0xff pattern:$0x75316420]
        %424 = vrot.lane.b32.xlu0 %v420, 112
        %v425 = vpop.permute.xlu0 %424
        %426 = vrot.lane.b32.xlu0 %v421, 112
        %v427 = vpop.permute.xlu0 %426
        %vm428 = vcmp.lt.s32.totalorder %v304, 112
        %v429 = vsel %vm428, %v425, %v427
        %v430 = vsel %vm428, %v427, %v425
        %v431 = vperm.slane %v310, 7
        %v432 = vperm.slane %v311, 7
        %vm433 = vcmp.eq.s32.totalorder %v431, 1
        %vm434 = vcmp.eq.s32.totalorder %v432, 1
        %v435 = vsel %vm433, %v429, 0.0
        %v436 = vsel %vm434, %v430, 0.0
        %437 = vst [vmem:[#allocation1] ss:$2 sm:$0xff] %v287
        %v438 = vld.sshfl [vmem:[#allocation1] sm:$0xff pattern:$0x75316420]
        %v439 = vld.sshfl [vmem:[#allocation1 + $0x8] sm:$0xff pattern:$0x75316420]
        %442 = vrot.lane.b32.xlu0 %v438, 111
        %v443 = vpop.permute.xlu0 %442
        %444 = vrot.lane.b32.xlu0 %v439, 111
        %v445 = vpop.permute.xlu0 %444
        %vm446 = vcmp.lt.s32.totalorder %v304, 111
        %v447 = vsel %vm446, %v443, %v445
        %v448 = vsel %vm446, %v445, %v443
        %vm449 = vcmp.gt.f32.partialorder %v290, 0.5
        %vm450 = vcmp.gt.f32.partialorder %v291, 0.5
        %v451 = vsel %vm449, 1, 0
        %v452 = vsel %vm450, 1, 0
        %v453 = vperm.slane %v451, 0
        %v454 = vperm.slane %v452, 0
        %vm455 = vcmp.eq.s32.totalorder %v453, 1
        %vm456 = vcmp.eq.s32.totalorder %v454, 1
        %v457 = vsel %vm455, %v447, 0.0
        %v458 = vsel %vm456, %v448, 0.0
        %v461 = vrot.slane %v334, 4
        %v462 = vrot.slane %v335, 4
        %v467 = vrot.slane %v370, 4
        %v468 = vrot.slane %v371, 4
        %v473 = vrot.slane %v399, 4
        %v474 = vrot.slane %v400, 4
        %v479 = vrot.slane %v435, 4
        %v480 = vrot.slane %v436, 4
        %vm483 = vcmask 1043456
        %v484 = vsel %vm483, %v316, %v461
        %v485 = vsel %vm483, %v317, %v462
        %v486 = vsel %vm483, %v352, %v467
        %v487 = vsel %vm483, %v353, %v468
        %v488 = vsel %vm483, %v381, %v473
        %v489 = vsel %vm483, %v382, %v474
        %v490 = vsel %vm483, %v417, %v479
        %v491 = vsel %vm483, %v418, %v480
        %v492 = vld [vmem:[%s3] sm:$0xf]
        %494 = vset.pattern.permute.xlu0 0
        %495 = vperm.xlu0 %494, %v492
        %v496 = vpop.permute.xlu0 %495
        %vm498 = vcmask 293888
        %v500 = vsel %vm498, %v292, 0
        %v503 = vsel %vm483, %v457, 0
        %v506 = vsel %vm483, %v458, 0
        %508 = vmatpush.msra.mxu0 0.0
        %509 = vmatpush.msra.mxu0 0.0
        %510 = vmatpush.msra.mxu0 0.0
        %511 = vmatpush.msra.mxu0 0.0
        %512 = vmatpush.msra.mxu0 0.0
        %513 = vmatpush.msra.mxu0 0.0
        %514 = vmatpush.msra.mxu0 0.0
        %515 = vmatpush.msra.mxu0 0.0
        %516 = vmatpush.msra.mxu0 0.0
        %517 = vmatpush.msra.mxu0 0.0
        %518 = vmatpush.msra.mxu0 0.0
        %519 = vmatpush.msra.mxu0 %v503
        %520 = vmatpush.msra.mxu0 %v490
        %521 = vmatpush.msra.mxu0 %v488
        %522 = vmatpush.msra.mxu0 %v486
        %523 = vmatpush.msra.mxu0 %v484
        %524 = vmatmul.f32.gmra.mxu0 %v500
        %v525 = vpop.f32.mrf.mxu0
        %v526 = vadd.f32 %v496, %v525
        %527 = vdwg.mxu0
        %528 = vmatpush.msra.mxu0 0.0
        %529 = vmatpush.msra.mxu0 0.0
        %530 = vmatpush.msra.mxu0 0.0
        %531 = vmatpush.msra.mxu0 0.0
        %532 = vmatpush.msra.mxu0 0.0
        %533 = vmatpush.msra.mxu0 0.0
        %534 = vmatpush.msra.mxu0 0.0
        %535 = vmatpush.msra.mxu0 0.0
        %536 = vmatpush.msra.mxu0 0.0
        %537 = vmatpush.msra.mxu0 0.0
        %538 = vmatpush.msra.mxu0 0.0
        %539 = vmatpush.msra.mxu0 %v506
        %540 = vmatpush.msra.mxu0 %v491
        %541 = vmatpush.msra.mxu0 %v489
        %542 = vmatpush.msra.mxu0 %v487
        %543 = vmatpush.msra.mxu0 %v485
        %544 = vmatmul.f32.gmra.mxu0 %v500
        %v545 = vpop.f32.mrf.mxu0
        %v546 = vadd.f32 %v496, %v545
        %547 = vdwg.mxu0
        %v548 = vmax.f32 %v526, 0.0
        %v549 = vmax.f32 %v546, 0.0
        %v550 = vld [vmem:[%s4] sm:$0xf]
        %551 = vrot.lane.b32.xlu0 %v548, 17
        %v552 = vpop.permute.xlu0 %551
        %553 = vrot.lane.b32.xlu0 %v549, 17
        %v554 = vpop.permute.xlu0 %553
        %v555 = vsel %vm305, %v552, %v554
        %v556 = vsel %vm305, %v554, %v552
        %v557 = vsel %vm314, %v556, 0.0
        %v558 = vsel %vm315, %v555, 0.0
        %559 = vrot.lane.b32.xlu0 %v548, 16
        %v560 = vpop.permute.xlu0 %559
        %561 = vrot.lane.b32.xlu0 %v549, 16
        %v562 = vpop.permute.xlu0 %561
        %v563 = vsel %vm327, %v560, %v562
        %v564 = vsel %vm327, %v562, %v560
        %v565 = vsel %vm332, %v564, 0.0
        %v566 = vsel %vm333, %v563, 0.0
        %567 = vrot.lane.b32.xlu0 %v548, 15
        %v568 = vpop.permute.xlu0 %567
        %569 = vrot.lane.b32.xlu0 %v549, 15
        %v570 = vpop.permute.xlu0 %569
        %v571 = vsel %vm345, %v568, %v570
        %v572 = vsel %vm345, %v570, %v568
        %v573 = vsel %vm350, %v572, 0.0
        %v574 = vsel %vm351, %v571, 0.0
        %575 = vrot.lane.b32.xlu0 %v548, 1
        %v576 = vpop.permute.xlu0 %575
        %577 = vrot.lane.b32.xlu0 %v549, 1
        %v578 = vpop.permute.xlu0 %577
        %v579 = vsel %vm363, %v576, %v578
        %v580 = vsel %vm363, %v578, %v576
        %v581 = vsel %vm368, %v580, 0.0
        %v582 = vsel %vm369, %v579, 0.0
        %v583 = vsel %vm374, %v548, 0.0
        %v584 = vsel %vm375, %v549, 0.0
        %585 = vrot.lane.b32.xlu0 %v548, 127
        %v586 = vpop.permute.xlu0 %585
        %587 = vrot.lane.b32.xlu0 %v549, 127
        %v588 = vpop.permute.xlu0 %587
        %v589 = vsel %vm392, %v586, %v588
        %v590 = vsel %vm392, %v588, %v586
        %v591 = vsel %vm397, %v589, 0.0
        %v592 = vsel %vm398, %v590, 0.0
        %593 = vrot.lane.b32.xlu0 %v548, 113
        %v594 = vpop.permute.xlu0 %593
        %595 = vrot.lane.b32.xlu0 %v549, 113
        %v596 = vpop.permute.xlu0 %595
        %v597 = vsel %vm410, %v594, %v596
        %v598 = vsel %vm410, %v596, %v594
        %v599 = vsel %vm415, %v597, 0.0
        %v600 = vsel %vm416, %v598, 0.0
        %601 = vrot.lane.b32.xlu0 %v548, 112
        %v602 = vpop.permute.xlu0 %601
        %603 = vrot.lane.b32.xlu0 %v549, 112
        %v604 = vpop.permute.xlu0 %603
        %v605 = vsel %vm428, %v602, %v604
        %v606 = vsel %vm428, %v604, %v602
        %v607 = vsel %vm433, %v605, 0.0
        %v608 = vsel %vm434, %v606, 0.0
        %609 = vrot.lane.b32.xlu0 %v548, 111
        %v610 = vpop.permute.xlu0 %609
        %611 = vrot.lane.b32.xlu0 %v549, 111
        %v612 = vpop.permute.xlu0 %611
        %v613 = vsel %vm446, %v610, %v612
        %v614 = vsel %vm446, %v612, %v610
        %v615 = vsel %vm455, %v613, 0.0
        %v616 = vsel %vm456, %v614, 0.0
        %v619 = vrot.slane %v565, 4
        %v620 = vrot.slane %v566, 4
        %v625 = vrot.slane %v581, 4
        %v626 = vrot.slane %v582, 4
        %v631 = vrot.slane %v591, 4
        %v632 = vrot.slane %v592, 4
        %v637 = vrot.slane %v607, 4
        %v638 = vrot.slane %v608, 4
        %v641 = vsel %vm483, %v557, %v619
        %v642 = vsel %vm483, %v558, %v620
        %v643 = vsel %vm483, %v573, %v625
        %v644 = vsel %vm483, %v574, %v626
        %v645 = vsel %vm483, %v583, %v631
        %v646 = vsel %vm483, %v584, %v632
        %v647 = vsel %vm483, %v599, %v637
        %v648 = vsel %vm483, %v600, %v638
        %v649 = vld [vmem:[%s5] sm:$0xf]
        %651 = vset.pattern.permute.xlu0 0
        %652 = vperm.xlu0 %651, %v649
        %v653 = vpop.permute.xlu0 %652
        %v656 = vsel %vm498, %v550, 0
        %v659 = vsel %vm483, %v615, 0
        %v662 = vsel %vm483, %v616, 0
        %664 = vmatpush.msra.mxu0 0.0
        %665 = vmatpush.msra.mxu0 0.0
        %666 = vmatpush.msra.mxu0 0.0
        %667 = vmatpush.msra.mxu0 0.0
        %668 = vmatpush.msra.mxu0 0.0
        %669 = vmatpush.msra.mxu0 0.0
        %670 = vmatpush.msra.mxu0 0.0
        %671 = vmatpush.msra.mxu0 0.0
        %672 = vmatpush.msra.mxu0 0.0
        %673 = vmatpush.msra.mxu0 0.0
        %674 = vmatpush.msra.mxu0 0.0
        %675 = vmatpush.msra.mxu0 %v659
        %676 = vmatpush.msra.mxu0 %v647
        %677 = vmatpush.msra.mxu0 %v645
        %678 = vmatpush.msra.mxu0 %v643
        %679 = vmatpush.msra.mxu0 %v641
        %680 = vmatmul.f32.gmra.mxu0 %v656
        %v681 = vpop.f32.mrf.mxu0
        %v682 = vadd.f32 %v653, %v681
        %683 = vdwg.mxu0
        %684 = vmatpush.msra.mxu0 0.0
        %685 = vmatpush.msra.mxu0 0.0
        %686 = vmatpush.msra.mxu0 0.0
        %687 = vmatpush.msra.mxu0 0.0
        %688 = vmatpush.msra.mxu0 0.0
        %689 = vmatpush.msra.mxu0 0.0
        %690 = vmatpush.msra.mxu0 0.0
        %691 = vmatpush.msra.mxu0 0.0
        %692 = vmatpush.msra.mxu0 0.0
        %693 = vmatpush.msra.mxu0 0.0
        %694 = vmatpush.msra.mxu0 0.0
        %695 = vmatpush.msra.mxu0 %v662
        %696 = vmatpush.msra.mxu0 %v648
        %697 = vmatpush.msra.mxu0 %v646
        %698 = vmatpush.msra.mxu0 %v644
        %699 = vmatpush.msra.mxu0 %v642
        %700 = vmatmul.f32.gmra.mxu0 %v656
        %v701 = vpop.f32.mrf.mxu0
        %v702 = vadd.f32 %v653, %v701
        %703 = vdwg.mxu0
        %v706 = vrot.slane %v702, 4
        %v707 = vsel %vm483, %v682, %v706
        %v709 = vadd.f32 %v287, %v707
        %v710 = vmul.f32 %v709, 0.5
        %v711 = vmax.f32 %v710, 0.0
        %712 = vst [vmem:[%s286] sm:$0xff] %v711
        %s713 = sand.u32 %s163, 1
        %s714 = scalar_lea.sflag [#allocation4], %s713
        %s715 = sand.u32 %s163, 1
        %s716 = smul.addr %s715, 8
        %s717 = scalar_lea.vmem [#allocation7], %s716
        // Predicated region
        $region53: #{tpu_custom_call.1} parent=43 // pred_check
          %p718 = pneg %p173
        $region54: #{tpu_custom_call.1} parent=43 // pred_check_branch
          %720 = sbr.rel (%p718) target = $region56
        $region55: #{tpu_custom_call.1} parent=43 // pred_region
          %722 = vsyncadd %s714, 0
          %s723 = smul.addr %s24, 2
          %s724 = smul.addr %s723, 4
          %s725 = scalar_lea.hbm %s6, %s724
          %s727 = sshll.u32 %s717, 4
          %s728 = int_to_ptr.vmem [resolvable:$true] %s727
          %s729 = sshll.u32 %s725, 4
          %s730 = int_to_ptr.hbm [resolvable:$true] %s729
          %732 = dma.vmem_to_hbm [thread:$0]  %s728, 128, %s730, %s714
        $region56: #{tpu_custom_call.1} parent=43 // pred_fallthru
          _
      $region44: #{tpu_custom_call.1} parent=5 // pred_fallthru
        _
      %p733 = scmp.le.s32.totalorder 2, %s19
      // Predicated region
      $region57: #{tpu_custom_call.1} parent=5 // pred_check
        %p734 = pneg %p733
      $region58: #{tpu_custom_call.1} parent=5 // pred_check_branch
        %736 = sbr.rel (%p734) target = $region60
      $region59: #{tpu_custom_call.1} parent=5 // pred_region
        %s737 = ssub.s32 %s19, 2
        // Predicated region
        $region61: #{tpu_custom_call.1} parent=59 // pred_check
          %p738 = pneg %p179
        $region62: #{tpu_custom_call.1} parent=59 // pred_check_branch
          %740 = sbr.rel (%p738) target = $region64
        $region63: #{tpu_custom_call.1} parent=59 // pred_region
          %s741 = sand.u32 %s164, 1
          %s742 = scalar_lea.sflag [#allocation4], %s741
          %s743 = sand.u32 %s164, 1
          %s744 = smul.addr %s743, 8
          %s745 = scalar_lea.vmem [#allocation7], %s744
          %747 = dma.done %s742, 128
        $region64: #{tpu_custom_call.1} parent=59 // pred_fallthru
          _
      $region60: #{tpu_custom_call.1} parent=5 // pred_fallthru
        _
    $region6: #{tpu_custom_call.1} parent=1 // loop_footer
      %s23 = sadd.s32 1, %s19
    $region7: #{tpu_custom_call.1} parent=1 // loop_footer_branch
      %18 = sbr.rel target = $region3
    $region8: #{tpu_custom_call.1} parent=1 // loop_exit
      _
    %748 = vsyncpa [#allocation3], 1
    %s749 = scalar_lea.sflag [#allocation3], 1
    %750 = vsyncpa %s749, 1
    %751 = vsyncpa [#allocation6], 1
    %s752 = scalar_lea.sflag [#allocation6], 1
    %753 = vsyncpa %s752, 1
    %754 = vsyncpa [#allocation4], 1
    %s755 = scalar_lea.sflag [#allocation4], 1
    %756 = vsyncpa %s755, 1

</llo_original>
